<compile_context>
chip_gen: v5e
topology: v5e:2x2
jax: 0.10.0
libtpu: 0.0.40
codegen_flags: <defaults>
</compile_context>

<pallas_src>
import jax
import jax.numpy as jnp
from jax import lax
from jax.experimental import pallas as pl
from jax.experimental.pallas import tpu as pltpu

INPUT_DIM = 6
HIDDEN_DIM = 4
LN_EPS = 1e-5
CHUNK = 8 * 128  # one (8,128) vreg worth of batch elements


def _agent_kernel(w1_ref, b1_ref,
                  ga_ref, bea_ref,
                  gv_ref, bev_ref,
                  wa_ref, ba_ref,
                  wv_ref, bv_ref,
                  x_ref, out_ref):
    # x_ref:   (INPUT_DIM, C, 8, 128)   batch spread over chunks x sublanes x lanes
    # out_ref: (2,         C, 8, 128)   row 0 = action probs, row 1 = state value
    C = x_ref.shape[1]

    # Hoist all tiny SMEM scalar reads out of the chunk loop (loop-invariant).
    w1 = [[w1_ref[k, h] for h in range(HIDDEN_DIM)] for k in range(INPUT_DIM)]
    b1 = [b1_ref[h] for h in range(HIDDEN_DIM)]
    ga = [ga_ref[h] for h in range(HIDDEN_DIM)]      # already gamma * sqrt(H)
    bea = [bea_ref[h] for h in range(HIDDEN_DIM)]
    gv = [gv_ref[h] for h in range(HIDDEN_DIM)]      # already gamma * sqrt(H)
    bev = [bev_ref[h] for h in range(HIDDEN_DIM)]
    wa = [wa_ref[h] for h in range(HIDDEN_DIM)]
    wv = [wv_ref[h] for h in range(HIDDEN_DIM)]
    ba = ba_ref[0]
    bv = bv_ref[0]

    def chunk_body(c, carry):
        # One (8,128)-dense chunk of the batch per iteration.
        xs = [x_ref[k, c] for k in range(INPUT_DIM)]            # 6 x (8,128)

        # ---- feature encoder: enc[h] = tanh(sum_k w1[k,h]*x[k] + b1[h]) ----
        enc = []
        for h in range(HIDDEN_DIM):
            s = xs[0] * w1[0][h]
            for k in range(1, INPUT_DIM):
                s = s + xs[k] * w1[k][h]
            enc.append(jnp.tanh(s + b1[h]))                     # (8,128)

        # ---- shared LayerNorm statistics over the hidden axis (biased var).
        # Constants pre-folded: rstd' = rsqrt(sum_sq + H*eps) and the sqrt(H)
        # factor lives in ga/gv, so norm[h]*ga[h] == true LayerNorm output.
        ssum = enc[0]
        for h in range(1, HIDDEN_DIM):
            ssum = ssum + enc[h]
        mu = ssum * (1.0 / HIDDEN_DIM)
        cen = [e - mu for e in enc]
        sq = cen[0] * cen[0]
        for h in range(1, HIDDEN_DIM):
            sq = sq + cen[h] * cen[h]
        rstd = lax.rsqrt(sq + float(HIDDEN_DIM) * LN_EPS)
        norm = [cc * rstd for cc in cen]                        # (8,128) each

        # ---- actor / value heads: LN affine + ReLU + 4->1 projection ----
        logits = ba
        value = bv
        for h in range(HIDDEN_DIM):
            a = jnp.maximum(norm[h] * ga[h] + bea[h], 0.0)
            v = jnp.maximum(norm[h] * gv[h] + bev[h], 0.0)
            logits = logits + a * wa[h]
            value = value + v * wv[h]

        # Full-vreg (8,128) stores (no masked sub-sublane vst).
        out_ref[0, c] = jax.nn.sigmoid(logits)
        out_ref[1, c] = value
        return carry

    # fori_loop bounds live ranges per chunk; unroll tiny trip counts for LLO.
    lax.fori_loop(0, C, chunk_body, 0, unroll=(C <= 4))


def factor_selection_agent_forward(x, params, tile_cols=32768, min_tiles=2,
                                   x_pre_transposed=False):
    """Forward pass.

    x: (N, INPUT_DIM) float32 (or (INPUT_DIM, N) if x_pre_transposed=True).
    Returns (action_probs (N,), state_value (N,)) matching the torch module.
    """
    if x_pre_transposed:
        n = x.shape[1]
        x_t = x.astype(jnp.float32)
    else:
        n = x.shape[0]
        # One extra HBM pass; avoid by producing x as (INPUT_DIM, N) upstream.
        x_t = x.astype(jnp.float32).T

    # --- tile sizing: big tiles to amortize grid-step overhead, but keep
    # --- >= min_tiles grid steps so v7x's second TensorCore gets work.
    n_chunks = max(1, pl.cdiv(n, CHUNK))
    max_cpt = max(1, tile_cols // CHUNK)
    cpt = max(1, min(max_cpt, pl.cdiv(n_chunks, min_tiles)))   # chunks per tile
    num_tiles = pl.cdiv(n_chunks, cpt)
    total_chunks = num_tiles * cpt
    n_pad = total_chunks * CHUNK

    # Zero-pad the batch and fold it onto (chunks, 8 sublanes, 128 lanes).
    x_t = jnp.pad(x_t, ((0, 0), (0, n_pad - n)))
    x_t = x_t.reshape(INPUT_DIM, total_chunks, 8, 128)

    # Pre-fold LayerNorm scalar algebra (trace-time only).
    h_sqrt = float(HIDDEN_DIM) ** 0.5
    ga = (params["ln_a_gamma"] * h_sqrt).astype(jnp.float32)
    gv = (params["ln_v_gamma"] * h_sqrt).astype(jnp.float32)

    smem = pl.BlockSpec(memory_space=pltpu.MemorySpace.SMEM)

    out = pl.pallas_call(
        _agent_kernel,
        grid=(num_tiles,),
        in_specs=[smem] * 10 + [
            pl.BlockSpec((INPUT_DIM, cpt, 8, 128), lambda i: (0, i, 0, 0)),
        ],
        out_specs=pl.BlockSpec((2, cpt, 8, 128), lambda i: (0, i, 0, 0)),
        out_shape=jax.ShapeDtypeStruct((2, total_chunks, 8, 128), jnp.float32),
        compiler_params=pltpu.CompilerParams(
            dimension_semantics=("parallel",)),
    )(params["w1"], params["b1"],
      ga, params["ln_a_beta"],
      gv, params["ln_v_beta"],
      params["wa"], params["ba"],
      params["wv"], params["bv"],
      x_t)

    out = out.reshape(2, n_pad)
    # torch .squeeze() on (N, 1) -> (N,)
    return out[0, :n], out[1, :n]


def init_params(key, input_dim=INPUT_DIM, hidden_dim=HIDDEN_DIM):
    """Deterministic synthetic parameters (same semantics as the torch module)."""
    ks = jax.random.split(key, 10)
    return {
        # feature_encoder: Linear(input_dim, hidden_dim) stored as (in, out)
        "w1": jax.random.normal(ks[0], (input_dim, hidden_dim), jnp.float32) * 0.3,
        "b1": jax.random.normal(ks[1], (hidden_dim,), jnp.float32) * 0.1,
        # actor_head: LayerNorm(hidden_dim) + Linear(hidden_dim, 1)
        "ln_a_gamma": 1.0 + 0.1 * jax.random.normal(ks[2], (hidden_dim,), jnp.float32),
        "ln_a_beta": 0.1 * jax.random.normal(ks[3], (hidden_dim,), jnp.float32),
        "wa": jax.random.normal(ks[4], (hidden_dim,), jnp.float32) * 0.3,
        "ba": jax.random.normal(ks[5], (1,), jnp.float32) * 0.1,
        # value_head: LayerNorm(hidden_dim) + Linear(hidden_dim, 1)
        "ln_v_gamma": 1.0 + 0.1 * jax.random.normal(ks[6], (hidden_dim,), jnp.float32),
        "ln_v_beta": 0.1 * jax.random.normal(ks[7], (hidden_dim,), jnp.float32),
        "wv": jax.random.normal(ks[8], (hidden_dim,), jnp.float32) * 0.3,
        "bv": jax.random.normal(ks[9], (1,), jnp.float32) * 0.1,
    }


def _reference_forward(x, p):
    enc = jnp.tanh(x @ p["w1"] + p["b1"])

    def head(gamma, beta, w, b):
        mu = jnp.mean(enc, axis=-1, keepdims=True)
        var = jnp.mean((enc - mu) ** 2, axis=-1, keepdims=True)
        ln = (enc - mu) / jnp.sqrt(var + LN_EPS) * gamma + beta
        return jnp.maximum(ln, 0.0) @ w + b

    logits = head(p["ln_a_gamma"], p["ln_a_beta"], p["wa"], p["ba"])
    value = head(p["ln_v_gamma"], p["ln_v_beta"], p["wv"], p["bv"])
    return jax.nn.sigmoid(logits), value


if __name__ == "__main__":
    key = jax.random.PRNGKey(0)
    kx, kp = jax.random.split(key)
    params = init_params(kp)

    # Small batch matching the torch module (single chunk, single tile).
    n_small = 8
    x_small = jax.random.normal(kx, (n_small, INPUT_DIM), jnp.float32)
    probs, value = factor_selection_agent_forward(x_small, params)
    jax.block_until_ready((probs, value))
    ref_p, ref_v = _reference_forward(x_small, params)
    assert probs.shape == (n_small,) and value.shape == (n_small,)
    assert jnp.allclose(probs, ref_p, atol=1e-5, rtol=1e-5)
    assert jnp.allclose(value, ref_v, atol=1e-5, rtol=1e-5)

    # Ragged batch exercising multiple chunks, multiple tiles and padding.
    n_big = 4500
    x_big = jax.random.normal(jax.random.PRNGKey(1), (n_big, INPUT_DIM), jnp.float32)
    probs_b, value_b = factor_selection_agent_forward(x_big, params)
    jax.block_until_ready((probs_b, value_b))
    ref_pb, ref_vb = _reference_forward(x_big, params)
    assert probs_b.shape == (n_big,) and value_b.shape == (n_big,)
    assert jnp.allclose(probs_b, ref_pb, atol=1e-5, rtol=1e-5)
    assert jnp.allclose(value_b, ref_vb, atol=1e-5, rtol=1e-5)

    print("KERNEL_OK")
</pallas_src>

<mosaic_0001>
module attributes {stable_mosaic.version = 11 : i64} {
  func.func @_agent_kernel(%arg0: i32, %arg1: memref<6x4xf32, #tpu.memory_space<smem>>, %arg2: memref<4xf32, #tpu.memory_space<smem>>, %arg3: memref<4xf32, #tpu.memory_space<smem>>, %arg4: memref<4xf32, #tpu.memory_space<smem>>, %arg5: memref<4xf32, #tpu.memory_space<smem>>, %arg6: memref<4xf32, #tpu.memory_space<smem>>, %arg7: memref<4xf32, #tpu.memory_space<smem>>, %arg8: memref<1xf32, #tpu.memory_space<smem>>, %arg9: memref<4xf32, #tpu.memory_space<smem>>, %arg10: memref<1xf32, #tpu.memory_space<smem>>, %arg11: memref<6x1x8x128xf32, #tpu.memory_space<vmem>>, %arg12: memref<2x1x8x128xf32, #tpu.memory_space<vmem>>) attributes {dimension_semantics = [#tpu.dimension_semantics<parallel>], iteration_bounds = array<i64: 1>, scalar_prefetch = 0 : i64, scratch_operands = 0 : i64, tpu.core_type = #tpu.core_type<tc>, window_params = [{transform_indices = @transform_0, window_bounds = array<i64: 6, 4>}, {transform_indices = @transform_1, window_bounds = array<i64: 4>}, {transform_indices = @transform_2, window_bounds = array<i64: 4>}, {transform_indices = @transform_3, window_bounds = array<i64: 4>}, {transform_indices = @transform_4, window_bounds = array<i64: 4>}, {transform_indices = @transform_5, window_bounds = array<i64: 4>}, {transform_indices = @transform_6, window_bounds = array<i64: 4>}, {transform_indices = @transform_7, window_bounds = array<i64: 1>}, {transform_indices = @transform_8, window_bounds = array<i64: 4>}, {transform_indices = @transform_9, window_bounds = array<i64: 1>}, {transform_indices = @transform_10, window_bounds = array<i64: 6, 1, 8, 128>}, {transform_indices = @transform_11, window_bounds = array<i64: 2, 1, 8, 128>}]} {
    %c0 = arith.constant 0 : index
    %c0_0 = arith.constant 0 : index
    %0 = memref.load %arg1[%c0, %c0_0] : memref<6x4xf32, #tpu.memory_space<smem>>
    %c0_1 = arith.constant 0 : index
    %c1 = arith.constant 1 : index
    %1 = memref.load %arg1[%c0_1, %c1] : memref<6x4xf32, #tpu.memory_space<smem>>
    %c0_2 = arith.constant 0 : index
    %c2 = arith.constant 2 : index
    %2 = memref.load %arg1[%c0_2, %c2] : memref<6x4xf32, #tpu.memory_space<smem>>
    %c0_3 = arith.constant 0 : index
    %c3 = arith.constant 3 : index
    %3 = memref.load %arg1[%c0_3, %c3] : memref<6x4xf32, #tpu.memory_space<smem>>
    %c1_4 = arith.constant 1 : index
    %c0_5 = arith.constant 0 : index
    %4 = memref.load %arg1[%c1_4, %c0_5] : memref<6x4xf32, #tpu.memory_space<smem>>
    %c1_6 = arith.constant 1 : index
    %c1_7 = arith.constant 1 : index
    %5 = memref.load %arg1[%c1_6, %c1_7] : memref<6x4xf32, #tpu.memory_space<smem>>
    %c1_8 = arith.constant 1 : index
    %c2_9 = arith.constant 2 : index
    %6 = memref.load %arg1[%c1_8, %c2_9] : memref<6x4xf32, #tpu.memory_space<smem>>
    %c1_10 = arith.constant 1 : index
    %c3_11 = arith.constant 3 : index
    %7 = memref.load %arg1[%c1_10, %c3_11] : memref<6x4xf32, #tpu.memory_space<smem>>
    %c2_12 = arith.constant 2 : index
    %c0_13 = arith.constant 0 : index
    %8 = memref.load %arg1[%c2_12, %c0_13] : memref<6x4xf32, #tpu.memory_space<smem>>
    %c2_14 = arith.constant 2 : index
    %c1_15 = arith.constant 1 : index
    %9 = memref.load %arg1[%c2_14, %c1_15] : memref<6x4xf32, #tpu.memory_space<smem>>
    %c2_16 = arith.constant 2 : index
    %c2_17 = arith.constant 2 : index
    %10 = memref.load %arg1[%c2_16, %c2_17] : memref<6x4xf32, #tpu.memory_space<smem>>
    %c2_18 = arith.constant 2 : index
    %c3_19 = arith.constant 3 : index
    %11 = memref.load %arg1[%c2_18, %c3_19] : memref<6x4xf32, #tpu.memory_space<smem>>
    %c3_20 = arith.constant 3 : index
    %c0_21 = arith.constant 0 : index
    %12 = memref.load %arg1[%c3_20, %c0_21] : memref<6x4xf32, #tpu.memory_space<smem>>
    %c3_22 = arith.constant 3 : index
    %c1_23 = arith.constant 1 : index
    %13 = memref.load %arg1[%c3_22, %c1_23] : memref<6x4xf32, #tpu.memory_space<smem>>
    %c3_24 = arith.constant 3 : index
    %c2_25 = arith.constant 2 : index
    %14 = memref.load %arg1[%c3_24, %c2_25] : memref<6x4xf32, #tpu.memory_space<smem>>
    %c3_26 = arith.constant 3 : index
    %c3_27 = arith.constant 3 : index
    %15 = memref.load %arg1[%c3_26, %c3_27] : memref<6x4xf32, #tpu.memory_space<smem>>
    %c4 = arith.constant 4 : index
    %c0_28 = arith.constant 0 : index
    %16 = memref.load %arg1[%c4, %c0_28] : memref<6x4xf32, #tpu.memory_space<smem>>
    %c4_29 = arith.constant 4 : index
    %c1_30 = arith.constant 1 : index
    %17 = memref.load %arg1[%c4_29, %c1_30] : memref<6x4xf32, #tpu.memory_space<smem>>
    %c4_31 = arith.constant 4 : index
    %c2_32 = arith.constant 2 : index
    %18 = memref.load %arg1[%c4_31, %c2_32] : memref<6x4xf32, #tpu.memory_space<smem>>
    %c4_33 = arith.constant 4 : index
    %c3_34 = arith.constant 3 : index
    %19 = memref.load %arg1[%c4_33, %c3_34] : memref<6x4xf32, #tpu.memory_space<smem>>
    %c5 = arith.constant 5 : index
    %c0_35 = arith.constant 0 : index
    %20 = memref.load %arg1[%c5, %c0_35] : memref<6x4xf32, #tpu.memory_space<smem>>
    %c5_36 = arith.constant 5 : index
    %c1_37 = arith.constant 1 : index
    %21 = memref.load %arg1[%c5_36, %c1_37] : memref<6x4xf32, #tpu.memory_space<smem>>
    %c5_38 = arith.constant 5 : index
    %c2_39 = arith.constant 2 : index
    %22 = memref.load %arg1[%c5_38, %c2_39] : memref<6x4xf32, #tpu.memory_space<smem>>
    %c5_40 = arith.constant 5 : index
    %c3_41 = arith.constant 3 : index
    %23 = memref.load %arg1[%c5_40, %c3_41] : memref<6x4xf32, #tpu.memory_space<smem>>
    %c0_42 = arith.constant 0 : index
    %24 = memref.load %arg2[%c0_42] : memref<4xf32, #tpu.memory_space<smem>>
    %c1_43 = arith.constant 1 : index
    %25 = memref.load %arg2[%c1_43] : memref<4xf32, #tpu.memory_space<smem>>
    %c2_44 = arith.constant 2 : index
    %26 = memref.load %arg2[%c2_44] : memref<4xf32, #tpu.memory_space<smem>>
    %c3_45 = arith.constant 3 : index
    %27 = memref.load %arg2[%c3_45] : memref<4xf32, #tpu.memory_space<smem>>
    %c0_46 = arith.constant 0 : index
    %28 = memref.load %arg3[%c0_46] : memref<4xf32, #tpu.memory_space<smem>>
    %c1_47 = arith.constant 1 : index
    %29 = memref.load %arg3[%c1_47] : memref<4xf32, #tpu.memory_space<smem>>
    %c2_48 = arith.constant 2 : index
    %30 = memref.load %arg3[%c2_48] : memref<4xf32, #tpu.memory_space<smem>>
    %c3_49 = arith.constant 3 : index
    %31 = memref.load %arg3[%c3_49] : memref<4xf32, #tpu.memory_space<smem>>
    %c0_50 = arith.constant 0 : index
    %32 = memref.load %arg4[%c0_50] : memref<4xf32, #tpu.memory_space<smem>>
    %c1_51 = arith.constant 1 : index
    %33 = memref.load %arg4[%c1_51] : memref<4xf32, #tpu.memory_space<smem>>
    %c2_52 = arith.constant 2 : index
    %34 = memref.load %arg4[%c2_52] : memref<4xf32, #tpu.memory_space<smem>>
    %c3_53 = arith.constant 3 : index
    %35 = memref.load %arg4[%c3_53] : memref<4xf32, #tpu.memory_space<smem>>
    %c0_54 = arith.constant 0 : index
    %36 = memref.load %arg5[%c0_54] : memref<4xf32, #tpu.memory_space<smem>>
    %c1_55 = arith.constant 1 : index
    %37 = memref.load %arg5[%c1_55] : memref<4xf32, #tpu.memory_space<smem>>
    %c2_56 = arith.constant 2 : index
    %38 = memref.load %arg5[%c2_56] : memref<4xf32, #tpu.memory_space<smem>>
    %c3_57 = arith.constant 3 : index
    %39 = memref.load %arg5[%c3_57] : memref<4xf32, #tpu.memory_space<smem>>
    %c0_58 = arith.constant 0 : index
    %40 = memref.load %arg6[%c0_58] : memref<4xf32, #tpu.memory_space<smem>>
    %c1_59 = arith.constant 1 : index
    %41 = memref.load %arg6[%c1_59] : memref<4xf32, #tpu.memory_space<smem>>
    %c2_60 = arith.constant 2 : index
    %42 = memref.load %arg6[%c2_60] : memref<4xf32, #tpu.memory_space<smem>>
    %c3_61 = arith.constant 3 : index
    %43 = memref.load %arg6[%c3_61] : memref<4xf32, #tpu.memory_space<smem>>
    %c0_62 = arith.constant 0 : index
    %44 = memref.load %arg7[%c0_62] : memref<4xf32, #tpu.memory_space<smem>>
    %c1_63 = arith.constant 1 : index
    %45 = memref.load %arg7[%c1_63] : memref<4xf32, #tpu.memory_space<smem>>
    %c2_64 = arith.constant 2 : index
    %46 = memref.load %arg7[%c2_64] : memref<4xf32, #tpu.memory_space<smem>>
    %c3_65 = arith.constant 3 : index
    %47 = memref.load %arg7[%c3_65] : memref<4xf32, #tpu.memory_space<smem>>
    %c0_66 = arith.constant 0 : index
    %48 = memref.load %arg9[%c0_66] : memref<4xf32, #tpu.memory_space<smem>>
    %c1_67 = arith.constant 1 : index
    %49 = memref.load %arg9[%c1_67] : memref<4xf32, #tpu.memory_space<smem>>
    %c2_68 = arith.constant 2 : index
    %50 = memref.load %arg9[%c2_68] : memref<4xf32, #tpu.memory_space<smem>>
    %c3_69 = arith.constant 3 : index
    %51 = memref.load %arg9[%c3_69] : memref<4xf32, #tpu.memory_space<smem>>
    %c0_70 = arith.constant 0 : index
    %52 = memref.load %arg8[%c0_70] : memref<1xf32, #tpu.memory_space<smem>>
    %c0_71 = arith.constant 0 : index
    %53 = memref.load %arg10[%c0_71] : memref<1xf32, #tpu.memory_space<smem>>
    %c0_i32 = arith.constant 0 : i32
    %c0_72 = arith.constant 0 : index
    %54 = arith.index_cast %c0_i32 : i32 to index
    %c0_73 = arith.constant 0 : index
    %c0_74 = arith.constant 0 : index
    %55 = vector.load %arg11[%c0_72, %54, %c0_73, %c0_74] : memref<6x1x8x128xf32, #tpu.memory_space<vmem>>, vector<1x1x8x128xf32>
    %56 = vector.shape_cast %55 : vector<1x1x8x128xf32> to vector<8x128xf32>
    %c1_75 = arith.constant 1 : index
    %57 = arith.index_cast %c0_i32 : i32 to index
    %c0_76 = arith.constant 0 : index
    %c0_77 = arith.constant 0 : index
    %58 = vector.load %arg11[%c1_75, %57, %c0_76, %c0_77] : memref<6x1x8x128xf32, #tpu.memory_space<vmem>>, vector<1x1x8x128xf32>
    %59 = vector.shape_cast %58 : vector<1x1x8x128xf32> to vector<8x128xf32>
    %c2_78 = arith.constant 2 : index
    %60 = arith.index_cast %c0_i32 : i32 to index
    %c0_79 = arith.constant 0 : index
    %c0_80 = arith.constant 0 : index
    %61 = vector.load %arg11[%c2_78, %60, %c0_79, %c0_80] : memref<6x1x8x128xf32, #tpu.memory_space<vmem>>, vector<1x1x8x128xf32>
    %62 = vector.shape_cast %61 : vector<1x1x8x128xf32> to vector<8x128xf32>
    %c3_81 = arith.constant 3 : index
    %63 = arith.index_cast %c0_i32 : i32 to index
    %c0_82 = arith.constant 0 : index
    %c0_83 = arith.constant 0 : index
    %64 = vector.load %arg11[%c3_81, %63, %c0_82, %c0_83] : memref<6x1x8x128xf32, #tpu.memory_space<vmem>>, vector<1x1x8x128xf32>
    %65 = vector.shape_cast %64 : vector<1x1x8x128xf32> to vector<8x128xf32>
    %c4_84 = arith.constant 4 : index
    %66 = arith.index_cast %c0_i32 : i32 to index
    %c0_85 = arith.constant 0 : index
    %c0_86 = arith.constant 0 : index
    %67 = vector.load %arg11[%c4_84, %66, %c0_85, %c0_86] : memref<6x1x8x128xf32, #tpu.memory_space<vmem>>, vector<1x1x8x128xf32>
    %68 = vector.shape_cast %67 : vector<1x1x8x128xf32> to vector<8x128xf32>
    %c5_87 = arith.constant 5 : index
    %69 = arith.index_cast %c0_i32 : i32 to index
    %c0_88 = arith.constant 0 : index
    %c0_89 = arith.constant 0 : index
    %70 = vector.load %arg11[%c5_87, %69, %c0_88, %c0_89] : memref<6x1x8x128xf32, #tpu.memory_space<vmem>>, vector<1x1x8x128xf32>
    %71 = vector.shape_cast %70 : vector<1x1x8x128xf32> to vector<8x128xf32>
    %72 = vector.broadcast %0 : f32 to vector<8x128xf32>
    %73 = arith.mulf %56, %72 : vector<8x128xf32>
    %74 = vector.broadcast %4 : f32 to vector<8x128xf32>
    %75 = arith.mulf %59, %74 : vector<8x128xf32>
    %76 = arith.addf %73, %75 : vector<8x128xf32>
    %77 = vector.broadcast %8 : f32 to vector<8x128xf32>
    %78 = arith.mulf %62, %77 : vector<8x128xf32>
    %79 = arith.addf %76, %78 : vector<8x128xf32>
    %80 = vector.broadcast %12 : f32 to vector<8x128xf32>
    %81 = arith.mulf %65, %80 : vector<8x128xf32>
    %82 = arith.addf %79, %81 : vector<8x128xf32>
    %83 = vector.broadcast %16 : f32 to vector<8x128xf32>
    %84 = arith.mulf %68, %83 : vector<8x128xf32>
    %85 = arith.addf %82, %84 : vector<8x128xf32>
    %86 = vector.broadcast %20 : f32 to vector<8x128xf32>
    %87 = arith.mulf %71, %86 : vector<8x128xf32>
    %88 = arith.addf %85, %87 : vector<8x128xf32>
    %89 = vector.broadcast %24 : f32 to vector<8x128xf32>
    %90 = arith.addf %88, %89 : vector<8x128xf32>
    %91 = math.tanh %90 : vector<8x128xf32>
    %92 = vector.broadcast %1 : f32 to vector<8x128xf32>
    %93 = arith.mulf %56, %92 : vector<8x128xf32>
    %94 = vector.broadcast %5 : f32 to vector<8x128xf32>
    %95 = arith.mulf %59, %94 : vector<8x128xf32>
    %96 = arith.addf %93, %95 : vector<8x128xf32>
    %97 = vector.broadcast %9 : f32 to vector<8x128xf32>
    %98 = arith.mulf %62, %97 : vector<8x128xf32>
    %99 = arith.addf %96, %98 : vector<8x128xf32>
    %100 = vector.broadcast %13 : f32 to vector<8x128xf32>
    %101 = arith.mulf %65, %100 : vector<8x128xf32>
    %102 = arith.addf %99, %101 : vector<8x128xf32>
    %103 = vector.broadcast %17 : f32 to vector<8x128xf32>
    %104 = arith.mulf %68, %103 : vector<8x128xf32>
    %105 = arith.addf %102, %104 : vector<8x128xf32>
    %106 = vector.broadcast %21 : f32 to vector<8x128xf32>
    %107 = arith.mulf %71, %106 : vector<8x128xf32>
    %108 = arith.addf %105, %107 : vector<8x128xf32>
    %109 = vector.broadcast %25 : f32 to vector<8x128xf32>
    %110 = arith.addf %108, %109 : vector<8x128xf32>
    %111 = math.tanh %110 : vector<8x128xf32>
    %112 = vector.broadcast %2 : f32 to vector<8x128xf32>
    %113 = arith.mulf %56, %112 : vector<8x128xf32>
    %114 = vector.broadcast %6 : f32 to vector<8x128xf32>
    %115 = arith.mulf %59, %114 : vector<8x128xf32>
    %116 = arith.addf %113, %115 : vector<8x128xf32>
    %117 = vector.broadcast %10 : f32 to vector<8x128xf32>
    %118 = arith.mulf %62, %117 : vector<8x128xf32>
    %119 = arith.addf %116, %118 : vector<8x128xf32>
    %120 = vector.broadcast %14 : f32 to vector<8x128xf32>
    %121 = arith.mulf %65, %120 : vector<8x128xf32>
    %122 = arith.addf %119, %121 : vector<8x128xf32>
    %123 = vector.broadcast %18 : f32 to vector<8x128xf32>
    %124 = arith.mulf %68, %123 : vector<8x128xf32>
    %125 = arith.addf %122, %124 : vector<8x128xf32>
    %126 = vector.broadcast %22 : f32 to vector<8x128xf32>
    %127 = arith.mulf %71, %126 : vector<8x128xf32>
    %128 = arith.addf %125, %127 : vector<8x128xf32>
    %129 = vector.broadcast %26 : f32 to vector<8x128xf32>
    %130 = arith.addf %128, %129 : vector<8x128xf32>
    %131 = math.tanh %130 : vector<8x128xf32>
    %132 = vector.broadcast %3 : f32 to vector<8x128xf32>
    %133 = arith.mulf %56, %132 : vector<8x128xf32>
    %134 = vector.broadcast %7 : f32 to vector<8x128xf32>
    %135 = arith.mulf %59, %134 : vector<8x128xf32>
    %136 = arith.addf %133, %135 : vector<8x128xf32>
    %137 = vector.broadcast %11 : f32 to vector<8x128xf32>
    %138 = arith.mulf %62, %137 : vector<8x128xf32>
    %139 = arith.addf %136, %138 : vector<8x128xf32>
    %140 = vector.broadcast %15 : f32 to vector<8x128xf32>
    %141 = arith.mulf %65, %140 : vector<8x128xf32>
    %142 = arith.addf %139, %141 : vector<8x128xf32>
    %143 = vector.broadcast %19 : f32 to vector<8x128xf32>
    %144 = arith.mulf %68, %143 : vector<8x128xf32>
    %145 = arith.addf %142, %144 : vector<8x128xf32>
    %146 = vector.broadcast %23 : f32 to vector<8x128xf32>
    %147 = arith.mulf %71, %146 : vector<8x128xf32>
    %148 = arith.addf %145, %147 : vector<8x128xf32>
    %149 = vector.broadcast %27 : f32 to vector<8x128xf32>
    %150 = arith.addf %148, %149 : vector<8x128xf32>
    %151 = math.tanh %150 : vector<8x128xf32>
    %152 = arith.addf %91, %111 : vector<8x128xf32>
    %153 = arith.addf %152, %131 : vector<8x128xf32>
    %154 = arith.addf %153, %151 : vector<8x128xf32>
    %cst = arith.constant 2.500000e-01 : f32
    %155 = vector.broadcast %cst : f32 to vector<8x128xf32>
    %156 = arith.mulf %154, %155 : vector<8x128xf32>
    %157 = arith.subf %91, %156 : vector<8x128xf32>
    %158 = arith.subf %111, %156 : vector<8x128xf32>
    %159 = arith.subf %131, %156 : vector<8x128xf32>
    %160 = arith.subf %151, %156 : vector<8x128xf32>
    %161 = arith.mulf %157, %157 : vector<8x128xf32>
    %162 = arith.mulf %158, %158 : vector<8x128xf32>
    %163 = arith.addf %161, %162 : vector<8x128xf32>
    %164 = arith.mulf %159, %159 : vector<8x128xf32>
    %165 = arith.addf %163, %164 : vector<8x128xf32>
    %166 = arith.mulf %160, %160 : vector<8x128xf32>
    %167 = arith.addf %165, %166 : vector<8x128xf32>
    %cst_90 = arith.constant 4.000000e-05 : f32
    %168 = vector.broadcast %cst_90 : f32 to vector<8x128xf32>
    %169 = arith.addf %167, %168 : vector<8x128xf32>
    %170 = math.rsqrt %169 : vector<8x128xf32>
    %171 = arith.mulf %157, %170 : vector<8x128xf32>
    %172 = arith.mulf %158, %170 : vector<8x128xf32>
    %173 = arith.mulf %159, %170 : vector<8x128xf32>
    %174 = arith.mulf %160, %170 : vector<8x128xf32>
    %175 = vector.broadcast %28 : f32 to vector<8x128xf32>
    %176 = arith.mulf %171, %175 : vector<8x128xf32>
    %177 = vector.broadcast %32 : f32 to vector<8x128xf32>
    %178 = arith.addf %176, %177 : vector<8x128xf32>
    %cst_91 = arith.constant 0.000000e+00 : f32
    %179 = vector.broadcast %cst_91 : f32 to vector<8x128xf32>
    %180 = arith.maximumf %178, %179 : vector<8x128xf32>
    %181 = vector.broadcast %36 : f32 to vector<8x128xf32>
    %182 = arith.mulf %171, %181 : vector<8x128xf32>
    %183 = vector.broadcast %40 : f32 to vector<8x128xf32>
    %184 = arith.addf %182, %183 : vector<8x128xf32>
    %cst_92 = arith.constant 0.000000e+00 : f32
    %185 = vector.broadcast %cst_92 : f32 to vector<8x128xf32>
    %186 = arith.maximumf %184, %185 : vector<8x128xf32>
    %187 = vector.broadcast %44 : f32 to vector<8x128xf32>
    %188 = arith.mulf %180, %187 : vector<8x128xf32>
    %189 = vector.broadcast %52 : f32 to vector<8x128xf32>
    %190 = arith.addf %189, %188 : vector<8x128xf32>
    %191 = vector.broadcast %48 : f32 to vector<8x128xf32>
    %192 = arith.mulf %186, %191 : vector<8x128xf32>
    %193 = vector.broadcast %53 : f32 to vector<8x128xf32>
    %194 = arith.addf %193, %192 : vector<8x128xf32>
    %195 = vector.broadcast %29 : f32 to vector<8x128xf32>
    %196 = arith.mulf %172, %195 : vector<8x128xf32>
    %197 = vector.broadcast %33 : f32 to vector<8x128xf32>
    %198 = arith.addf %196, %197 : vector<8x128xf32>
    %cst_93 = arith.constant 0.000000e+00 : f32
    %199 = vector.broadcast %cst_93 : f32 to vector<8x128xf32>
    %200 = arith.maximumf %198, %199 : vector<8x128xf32>
    %201 = vector.broadcast %37 : f32 to vector<8x128xf32>
    %202 = arith.mulf %172, %201 : vector<8x128xf32>
    %203 = vector.broadcast %41 : f32 to vector<8x128xf32>
    %204 = arith.addf %202, %203 : vector<8x128xf32>
    %cst_94 = arith.constant 0.000000e+00 : f32
    %205 = vector.broadcast %cst_94 : f32 to vector<8x128xf32>
    %206 = arith.maximumf %204, %205 : vector<8x128xf32>
    %207 = vector.broadcast %45 : f32 to vector<8x128xf32>
    %208 = arith.mulf %200, %207 : vector<8x128xf32>
    %209 = arith.addf %190, %208 : vector<8x128xf32>
    %210 = vector.broadcast %49 : f32 to vector<8x128xf32>
    %211 = arith.mulf %206, %210 : vector<8x128xf32>
    %212 = arith.addf %194, %211 : vector<8x128xf32>
    %213 = vector.broadcast %30 : f32 to vector<8x128xf32>
    %214 = arith.mulf %173, %213 : vector<8x128xf32>
    %215 = vector.broadcast %34 : f32 to vector<8x128xf32>
    %216 = arith.addf %214, %215 : vector<8x128xf32>
    %cst_95 = arith.constant 0.000000e+00 : f32
    %217 = vector.broadcast %cst_95 : f32 to vector<8x128xf32>
    %218 = arith.maximumf %216, %217 : vector<8x128xf32>
    %219 = vector.broadcast %38 : f32 to vector<8x128xf32>
    %220 = arith.mulf %173, %219 : vector<8x128xf32>
    %221 = vector.broadcast %42 : f32 to vector<8x128xf32>
    %222 = arith.addf %220, %221 : vector<8x128xf32>
    %cst_96 = arith.constant 0.000000e+00 : f32
    %223 = vector.broadcast %cst_96 : f32 to vector<8x128xf32>
    %224 = arith.maximumf %222, %223 : vector<8x128xf32>
    %225 = vector.broadcast %46 : f32 to vector<8x128xf32>
    %226 = arith.mulf %218, %225 : vector<8x128xf32>
    %227 = arith.addf %209, %226 : vector<8x128xf32>
    %228 = vector.broadcast %50 : f32 to vector<8x128xf32>
    %229 = arith.mulf %224, %228 : vector<8x128xf32>
    %230 = arith.addf %212, %229 : vector<8x128xf32>
    %231 = vector.broadcast %31 : f32 to vector<8x128xf32>
    %232 = arith.mulf %174, %231 : vector<8x128xf32>
    %233 = vector.broadcast %35 : f32 to vector<8x128xf32>
    %234 = arith.addf %232, %233 : vector<8x128xf32>
    %cst_97 = arith.constant 0.000000e+00 : f32
    %235 = vector.broadcast %cst_97 : f32 to vector<8x128xf32>
    %236 = arith.maximumf %234, %235 : vector<8x128xf32>
    %237 = vector.broadcast %39 : f32 to vector<8x128xf32>
    %238 = arith.mulf %174, %237 : vector<8x128xf32>
    %239 = vector.broadcast %43 : f32 to vector<8x128xf32>
    %240 = arith.addf %238, %239 : vector<8x128xf32>
    %cst_98 = arith.constant 0.000000e+00 : f32
    %241 = vector.broadcast %cst_98 : f32 to vector<8x128xf32>
    %242 = arith.maximumf %240, %241 : vector<8x128xf32>
    %243 = vector.broadcast %47 : f32 to vector<8x128xf32>
    %244 = arith.mulf %236, %243 : vector<8x128xf32>
    %245 = arith.addf %227, %244 : vector<8x128xf32>
    %246 = vector.broadcast %51 : f32 to vector<8x128xf32>
    %247 = arith.mulf %242, %246 : vector<8x128xf32>
    %248 = arith.addf %230, %247 : vector<8x128xf32>
    %249 = arith.negf %245 : vector<8x128xf32>
    %250 = math.exp %249 : vector<8x128xf32>
    %cst_99 = arith.constant 1.000000e+00 : f32
    %251 = vector.broadcast %cst_99 : f32 to vector<8x128xf32>
    %252 = arith.addf %251, %250 : vector<8x128xf32>
    %253 = arith.divf %251, %252 : vector<8x128xf32>
    %c0_100 = arith.constant 0 : index
    %254 = arith.index_cast %c0_i32 : i32 to index
    %c0_101 = arith.constant 0 : index
    %c0_102 = arith.constant 0 : index
    %255 = vector.load %arg12[%c0_100, %254, %c0_101, %c0_102] : memref<2x1x8x128xf32, #tpu.memory_space<vmem>>, vector<1x1x8x128xf32>
    %256 = vector.shape_cast %255 : vector<1x1x8x128xf32> to vector<8x128xf32>
    %257 = vector.shape_cast %253 : vector<8x128xf32> to vector<1x1x8x128xf32>
    tpu.vector_store %arg12[%c0_100, %254, %c0_101, %c0_102], %257 {strides = array<i32>} : memref<2x1x8x128xf32, #tpu.memory_space<vmem>>, vector<1x1x8x128xf32>,
    %c1_103 = arith.constant 1 : index
    %258 = arith.index_cast %c0_i32 : i32 to index
    %c0_104 = arith.constant 0 : index
    %c0_105 = arith.constant 0 : index
    %259 = vector.load %arg12[%c1_103, %258, %c0_104, %c0_105] : memref<2x1x8x128xf32, #tpu.memory_space<vmem>>, vector<1x1x8x128xf32>
    %260 = vector.shape_cast %259 : vector<1x1x8x128xf32> to vector<8x128xf32>
    %261 = vector.shape_cast %248 : vector<8x128xf32> to vector<1x1x8x128xf32>
    tpu.vector_store %arg12[%c1_103, %258, %c0_104, %c0_105], %261 {strides = array<i32>} : memref<2x1x8x128xf32, #tpu.memory_space<vmem>>, vector<1x1x8x128xf32>,
    %c1_i32 = arith.constant 1 : i32
    return
  }
  func.func @transform_0(%arg0: i32) -> (i32, i32) {
    %c0_i32 = arith.constant 0 : i32
    %c0_i32_0 = arith.constant 0 : i32
    %c0_i32_1 = arith.constant 0 : i32
    return %c0_i32, %c0_i32_0 : i32, i32
  }
  func.func @transform_1(%arg0: i32) -> i32 {
    %c0_i32 = arith.constant 0 : i32
    %c0_i32_0 = arith.constant 0 : i32
    return %c0_i32 : i32
  }
  func.func @transform_2(%arg0: i32) -> i32 {
    %c0_i32 = arith.constant 0 : i32
    %c0_i32_0 = arith.constant 0 : i32
    return %c0_i32 : i32
  }
  func.func @transform_3(%arg0: i32) -> i32 {
    %c0_i32 = arith.constant 0 : i32
    %c0_i32_0 = arith.constant 0 : i32
    return %c0_i32 : i32
  }
  func.func @transform_4(%arg0: i32) -> i32 {
    %c0_i32 = arith.constant 0 : i32
    %c0_i32_0 = arith.constant 0 : i32
    return %c0_i32 : i32
  }
  func.func @transform_5(%arg0: i32) -> i32 {
    %c0_i32 = arith.constant 0 : i32
    %c0_i32_0 = arith.constant 0 : i32
    return %c0_i32 : i32
  }
  func.func @transform_6(%arg0: i32) -> i32 {
    %c0_i32 = arith.constant 0 : i32
    %c0_i32_0 = arith.constant 0 : i32
    return %c0_i32 : i32
  }
  func.func @transform_7(%arg0: i32) -> i32 {
    %c0_i32 = arith.constant 0 : i32
    %c0_i32_0 = arith.constant 0 : i32
    return %c0_i32 : i32
  }
  func.func @transform_8(%arg0: i32) -> i32 {
    %c0_i32 = arith.constant 0 : i32
    %c0_i32_0 = arith.constant 0 : i32
    return %c0_i32 : i32
  }
  func.func @transform_9(%arg0: i32) -> i32 {
    %c0_i32 = arith.constant 0 : i32
    %c0_i32_0 = arith.constant 0 : i32
    return %c0_i32 : i32
  }
  func.func @transform_10(%arg0: i32) -> (i32, i32, i32, i32) {
    %c0_i32 = arith.constant 0 : i32
    %c0_i32_0 = arith.constant 0 : i32
    %c0_i32_1 = arith.constant 0 : i32
    %c0_i32_2 = arith.constant 0 : i32
    return %c0_i32, %arg0, %c0_i32_0, %c0_i32_1 : i32, i32, i32, i32
  }
  func.func @transform_11(%arg0: i32) -> (i32, i32, i32, i32) {
    %c0_i32 = arith.constant 0 : i32
    %c0_i32_0 = arith.constant 0 : i32
    %c0_i32_1 = arith.constant 0 : i32
    %c0_i32_2 = arith.constant 0 : i32
    return %c0_i32, %arg0, %c0_i32_0, %c0_i32_1 : i32, i32, i32, i32
  }
}

</mosaic_0001>

<llo_original>
// kernel: tpu_custom_call.1
$region0: #{tpu_custom_call.1}
  #allocation0 [shape = 'u32[]', space=smem, size = 0x4, offset = 0x4, fixed_abs, tag = 'smem constant byte address 0x4 - core index']
  #allocation1 [shape = 'u32[72,128]{1,0:T(1,128)}', space=vmem, size = 0x9000, scoped, tag = 'internal scratch']
  #allocation2 [shape = 'f32[1]{0:T(128)S(6)}', space=smem, size = 0x200, scoped, tag = 'scoped memory for tpu_custom_call.1']
  #allocation3 [shape = 'f32[1]{0:T(128)S(6)}', space=smem, size = 0x200, scoped, tag = 'scoped memory for tpu_custom_call.1']
  %s0 = inlined_call_operand.vmem [shape: f32[6,4], index: 0, kind: input, shape index: {}]
  %s1 = inlined_call_operand.vmem [shape: f32[4], index: 1, kind: input, shape index: {}]
  %s2 = inlined_call_operand.vmem [shape: f32[4], index: 2, kind: input, shape index: {}]
  %s3 = inlined_call_operand.vmem [shape: f32[4], index: 3, kind: input, shape index: {}]
  %s4 = inlined_call_operand.vmem [shape: f32[4], index: 4, kind: input, shape index: {}]
  %s5 = inlined_call_operand.vmem [shape: f32[4], index: 5, kind: input, shape index: {}]
  %s6 = inlined_call_operand.vmem [shape: f32[4], index: 6, kind: input, shape index: {}]
  %s7 = inlined_call_operand.<no memory space> [shape: f32[1], index: 7, kind: input, shape index: {}]
  %s8 = inlined_call_operand.vmem [shape: f32[4], index: 8, kind: input, shape index: {}]
  %s9 = inlined_call_operand.<no memory space> [shape: f32[1], index: 9, kind: input, shape index: {}]
  %s10 = inlined_call_operand.hbm [shape: f32[6,1,8,128], index: 10, kind: input, shape index: {}]
  %s11 = inlined_call_operand.hbm [shape: f32[2,1,8,128], index: 11, kind: output, shape index: {}]
  %s12 = sld [smem:[#allocation0]]
  $region90: #{tpu_custom_call.1} parent=0
    _
  %s14 = ssub.s32 1, %s12
  %s15 = scalar_select 0, %s14, %s12
  %16 = sst [smem:[#allocation2]] %s7
  %17 = sst [smem:[#allocation3]] %s9
  $region1: #{tpu_custom_call.1} parent=0
    #allocation4 [shape = 'u8[4096]{0}', space=smem, size = 0x1000, scoped, tag = 'input window, operand 0, single buffered']
    #allocation5 [shape = 's32[1]{0}', space=sflag, size = 0x4, scoped, tag = 'scoped memory for tpu_custom_call.1']
    #allocation6 [shape = 's32[1]{0}', space=sflag, size = 0x4, scoped, tag = 'scoped memory for tpu_custom_call.1']
    #allocation7 [shape = 's32[1]{0}', space=sflag, size = 0x4, scoped, tag = 'scoped memory for tpu_custom_call.1']
    #allocation8 [shape = 'u8[512]{0}', space=smem, size = 0x200, scoped, tag = 'input window, operand 1, single buffered']
    #allocation9 [shape = 's32[1]{0}', space=sflag, size = 0x4, scoped, tag = 'scoped memory for tpu_custom_call.1']
    #allocation10 [shape = 'u8[512]{0}', space=smem, size = 0x200, scoped, tag = 'input window, operand 2, single buffered']
    #allocation11 [shape = 'u8[512]{0}', space=smem, size = 0x200, scoped, tag = 'input window, operand 3, single buffered']
    #allocation12 [shape = 's32[1]{0}', space=sflag, size = 0x4, scoped, tag = 'scoped memory for tpu_custom_call.1']
    #allocation13 [shape = 'u8[512]{0}', space=smem, size = 0x200, scoped, tag = 'input window, operand 4, single buffered']
    #allocation14 [shape = 'u8[512]{0}', space=smem, size = 0x200, scoped, tag = 'input window, operand 5, single buffered']
    #allocation15 [shape = 's32[1]{0}', space=sflag, size = 0x4, scoped, tag = 'scoped memory for tpu_custom_call.1']
    #allocation16 [shape = 'u8[512]{0}', space=smem, size = 0x200, scoped, tag = 'input window, operand 6, single buffered']
    #allocation17 [shape = 'u8[512]{0}', space=smem, size = 0x200, scoped, tag = 'input window, operand 8, single buffered']
    #allocation18 [shape = 's32[1]{0}', space=sflag, size = 0x4, scoped, tag = 'scoped memory for tpu_custom_call.1']
    #allocation19 [shape = 'u8[24576]{0}', space=vmem, size = 0x6000, scoped, tag = 'input window, operand 10, single buffered']
    #allocation20 [shape = 'u8[8192]{0}', space=vmem, size = 0x2000, scoped, tag = 'output window, operand 0, single buffered']
    %18 = vsyncpa [#allocation7], 0
    %19 = vsyncpa [#allocation9], 0
    %20 = vsyncpa [#allocation12], 0
    %21 = vsyncpa [#allocation15], 0
    %22 = vsyncpa [#allocation18], 0
    %23 = vsyncpa [#allocation5], 0
    %24 = vsyncpa [#allocation6], 0
    // Predicated region
    $region2: #{tpu_custom_call.1} parent=1 // pred_check
      _
    $region3: #{tpu_custom_call.1} parent=1 // pred_check_branch
      %26 = sbr.rel (0) target = $region5
    $region4: #{tpu_custom_call.1} parent=1 // pred_region
      %28 = vsyncadd [#allocation7], 0
      %s30 = sshll.u32 %s0, 4
      %s31 = int_to_ptr.vmem [resolvable:$true] %s30
      %33 = dma.vmem_to_smem %s31, 128, [#allocation4], [#allocation7]
    $region5: #{tpu_custom_call.1} parent=1 // pred_fallthru
      _
    // Predicated region
    $region6: #{tpu_custom_call.1} parent=1 // pred_check
      _
    $region7: #{tpu_custom_call.1} parent=1 // pred_check_branch
      %35 = sbr.rel (0) target = $region9
    $region8: #{tpu_custom_call.1} parent=1 // pred_region
      %37 = vsyncadd [#allocation9], 0
      %s39 = sshll.u32 %s1, 4
      %s40 = int_to_ptr.vmem [resolvable:$true] %s39
      %42 = dma.vmem_to_smem %s40, 16, [#allocation8], [#allocation9]
    $region9: #{tpu_custom_call.1} parent=1 // pred_fallthru
      _
    // Predicated region
    $region10: #{tpu_custom_call.1} parent=1 // pred_check
      _
    $region11: #{tpu_custom_call.1} parent=1 // pred_check_branch
      %44 = sbr.rel (0) target = $region13
    $region12: #{tpu_custom_call.1} parent=1 // pred_region
      %46 = vsyncadd [#allocation9], 0
      %s48 = sshll.u32 %s2, 4
      %s49 = int_to_ptr.vmem [resolvable:$true] %s48
      %51 = dma.vmem_to_smem %s49, 16, [#allocation10], [#allocation9]
    $region13: #{tpu_custom_call.1} parent=1 // pred_fallthru
      _
    // Predicated region
    $region14: #{tpu_custom_call.1} parent=1 // pred_check
      _
    $region15: #{tpu_custom_call.1} parent=1 // pred_check_branch
      %53 = sbr.rel (0) target = $region17
    $region16: #{tpu_custom_call.1} parent=1 // pred_region
      %55 = vsyncadd [#allocation12], 0
      %s57 = sshll.u32 %s3, 4
      %s58 = int_to_ptr.vmem [resolvable:$true] %s57
      %60 = dma.vmem_to_smem %s58, 16, [#allocation11], [#allocation12]
    $region17: #{tpu_custom_call.1} parent=1 // pred_fallthru
      _
    // Predicated region
    $region18: #{tpu_custom_call.1} parent=1 // pred_check
      _
    $region19: #{tpu_custom_call.1} parent=1 // pred_check_branch
      %62 = sbr.rel (0) target = $region21
    $region20: #{tpu_custom_call.1} parent=1 // pred_region
      %64 = vsyncadd [#allocation12], 0
      %s66 = sshll.u32 %s4, 4
      %s67 = int_to_ptr.vmem [resolvable:$true] %s66
      %69 = dma.vmem_to_smem %s67, 16, [#allocation13], [#allocation12]
    $region21: #{tpu_custom_call.1} parent=1 // pred_fallthru
      _
    // Predicated region
    $region22: #{tpu_custom_call.1} parent=1 // pred_check
      _
    $region23: #{tpu_custom_call.1} parent=1 // pred_check_branch
      %71 = sbr.rel (0) target = $region25
    $region24: #{tpu_custom_call.1} parent=1 // pred_region
      %73 = vsyncadd [#allocation15], 0
      %s75 = sshll.u32 %s5, 4
      %s76 = int_to_ptr.vmem [resolvable:$true] %s75
      %78 = dma.vmem_to_smem %s76, 16, [#allocation14], [#allocation15]
    $region25: #{tpu_custom_call.1} parent=1 // pred_fallthru
      _
    // Predicated region
    $region26: #{tpu_custom_call.1} parent=1 // pred_check
      _
    $region27: #{tpu_custom_call.1} parent=1 // pred_check_branch
      %80 = sbr.rel (0) target = $region29
    $region28: #{tpu_custom_call.1} parent=1 // pred_region
      %82 = vsyncadd [#allocation15], 0
      %s84 = sshll.u32 %s6, 4
      %s85 = int_to_ptr.vmem [resolvable:$true] %s84
      %87 = dma.vmem_to_smem %s85, 16, [#allocation16], [#allocation15]
    $region29: #{tpu_custom_call.1} parent=1 // pred_fallthru
      _
    // Predicated region
    $region30: #{tpu_custom_call.1} parent=1 // pred_check
      _
    $region31: #{tpu_custom_call.1} parent=1 // pred_check_branch
      %89 = sbr.rel (0) target = $region33
    $region32: #{tpu_custom_call.1} parent=1 // pred_region
      _
    $region33: #{tpu_custom_call.1} parent=1 // pred_fallthru
      _
    // Predicated region
    $region34: #{tpu_custom_call.1} parent=1 // pred_check
      _
    $region35: #{tpu_custom_call.1} parent=1 // pred_check_branch
      %91 = sbr.rel (0) target = $region37
    $region36: #{tpu_custom_call.1} parent=1 // pred_region
      %93 = vsyncadd [#allocation18], 0
      %s95 = sshll.u32 %s8, 4
      %s96 = int_to_ptr.vmem [resolvable:$true] %s95
      %98 = dma.vmem_to_smem %s96, 16, [#allocation17], [#allocation18]
    $region37: #{tpu_custom_call.1} parent=1 // pred_fallthru
      _
    // Predicated region
    $region38: #{tpu_custom_call.1} parent=1 // pred_check
      _
    $region39: #{tpu_custom_call.1} parent=1 // pred_check_branch
      %100 = sbr.rel (0) target = $region41
    $region40: #{tpu_custom_call.1} parent=1 // pred_region
      _
    $region41: #{tpu_custom_call.1} parent=1 // pred_fallthru
      _
    // Predicated region
    $region42: #{tpu_custom_call.1} parent=1 // pred_check
      _
    $region43: #{tpu_custom_call.1} parent=1 // pred_check_branch
      %102 = sbr.rel (0) target = $region45
    $region44: #{tpu_custom_call.1} parent=1 // pred_region
      %104 = vsyncadd [#allocation5], 0
      %s105 = sshll.u32 %s10, 4
      %s106 = int_to_ptr.hbm [resolvable:$true] %s105
      %s107 = sshll.u32 [#allocation19], 4
      %s108 = int_to_ptr.vmem [resolvable:$true] %s107
      %113 = dma.hbm_to_vmem [thread:$0]  %s106, 768, %s108, [#allocation5], 128, 128, 8
    $region45: #{tpu_custom_call.1} parent=1 // pred_fallthru
      _
    // Predicated region
    $region46: #{tpu_custom_call.1} parent=1 // pred_check
      _
    $region47: #{tpu_custom_call.1} parent=1 // pred_check_branch
      %115 = sbr.rel (0) target = $region49
    $region48: #{tpu_custom_call.1} parent=1 // pred_region
      %117 = dma.done [#allocation7], 128
    $region49: #{tpu_custom_call.1} parent=1 // pred_fallthru
      _
    // Predicated region
    $region50: #{tpu_custom_call.1} parent=1 // pred_check
      _
    $region51: #{tpu_custom_call.1} parent=1 // pred_check_branch
      %119 = sbr.rel (0) target = $region53
    $region52: #{tpu_custom_call.1} parent=1 // pred_region
      %121 = dma.done [#allocation9], 16
    $region53: #{tpu_custom_call.1} parent=1 // pred_fallthru
      _
    // Predicated region
    $region54: #{tpu_custom_call.1} parent=1 // pred_check
      _
    $region55: #{tpu_custom_call.1} parent=1 // pred_check_branch
      %123 = sbr.rel (0) target = $region57
    $region56: #{tpu_custom_call.1} parent=1 // pred_region
      %125 = dma.done [#allocation9], 16
    $region57: #{tpu_custom_call.1} parent=1 // pred_fallthru
      _
    // Predicated region
    $region58: #{tpu_custom_call.1} parent=1 // pred_check
      _
    $region59: #{tpu_custom_call.1} parent=1 // pred_check_branch
      %127 = sbr.rel (0) target = $region61
    $region60: #{tpu_custom_call.1} parent=1 // pred_region
      %129 = dma.done [#allocation12], 16
    $region61: #{tpu_custom_call.1} parent=1 // pred_fallthru
      _
    // Predicated region
    $region62: #{tpu_custom_call.1} parent=1 // pred_check
      _
    $region63: #{tpu_custom_call.1} parent=1 // pred_check_branch
      %131 = sbr.rel (0) target = $region65
    $region64: #{tpu_custom_call.1} parent=1 // pred_region
      %133 = dma.done [#allocation12], 16
    $region65: #{tpu_custom_call.1} parent=1 // pred_fallthru
      _
    // Predicated region
    $region66: #{tpu_custom_call.1} parent=1 // pred_check
      _
    $region67: #{tpu_custom_call.1} parent=1 // pred_check_branch
      %135 = sbr.rel (0) target = $region69
    $region68: #{tpu_custom_call.1} parent=1 // pred_region
      %137 = dma.done [#allocation15], 16
    $region69: #{tpu_custom_call.1} parent=1 // pred_fallthru
      _
    // Predicated region
    $region70: #{tpu_custom_call.1} parent=1 // pred_check
      _
    $region71: #{tpu_custom_call.1} parent=1 // pred_check_branch
      %139 = sbr.rel (0) target = $region73
    $region72: #{tpu_custom_call.1} parent=1 // pred_region
      %141 = dma.done [#allocation15], 16
    $region73: #{tpu_custom_call.1} parent=1 // pred_fallthru
      _
    // Predicated region
    $region74: #{tpu_custom_call.1} parent=1 // pred_check
      _
    $region75: #{tpu_custom_call.1} parent=1 // pred_check_branch
      %143 = sbr.rel (0) target = $region77
    $region76: #{tpu_custom_call.1} parent=1 // pred_region
      %145 = dma.done [#allocation18], 16
    $region77: #{tpu_custom_call.1} parent=1 // pred_fallthru
      _
    // Predicated region
    $region78: #{tpu_custom_call.1} parent=1 // pred_check
      _
    $region79: #{tpu_custom_call.1} parent=1 // pred_check_branch
      %147 = sbr.rel (0) target = $region81
    $region80: #{tpu_custom_call.1} parent=1 // pred_region
      %149 = dma.done [#allocation5], 768
    $region81: #{tpu_custom_call.1} parent=1 // pred_fallthru
      _
    %150 = sfence
    %s151 = sld [smem:[#allocation4]]
    %s152 = sld [smem:[#allocation4 + $0x1]]
    %s153 = sld [smem:[#allocation4 + $0x2]]
    %s154 = sld [smem:[#allocation4 + $0x3]]
    %s155 = sld [smem:[#allocation4 + $0x80]]
    %s156 = sld [smem:[#allocation4 + $0x81]]
    %s157 = sld [smem:[#allocation4 + $0x82]]
    %s158 = sld [smem:[#allocation4 + $0x83]]
    %s159 = sld [smem:[#allocation4 + $0x100]]
    %s160 = sld [smem:[#allocation4 + $0x101]]
    %s161 = sld [smem:[#allocation4 + $0x102]]
    %s162 = sld [smem:[#allocation4 + $0x103]]
    %s163 = sld [smem:[#allocation4 + $0x180]]
    %s164 = sld [smem:[#allocation4 + $0x181]]
    %s165 = sld [smem:[#allocation4 + $0x182]]
    %s166 = sld [smem:[#allocation4 + $0x183]]
    %s167 = sld [smem:[#allocation4 + $0x200]]
    %s168 = sld [smem:[#allocation4 + $0x201]]
    %s169 = sld [smem:[#allocation4 + $0x202]]
    %s170 = sld [smem:[#allocation4 + $0x203]]
    %s171 = sld [smem:[#allocation4 + $0x280]]
    %s172 = sld [smem:[#allocation4 + $0x281]]
    %s173 = sld [smem:[#allocation4 + $0x282]]
    %s174 = sld [smem:[#allocation4 + $0x283]]
    %s175 = sld [smem:[#allocation8]]
    %s176 = sld [smem:[#allocation8 + $0x1]]
    %s177 = sld [smem:[#allocation8 + $0x2]]
    %s178 = sld [smem:[#allocation8 + $0x3]]
    %s179 = sld [smem:[#allocation10]]
    %s180 = sld [smem:[#allocation10 + $0x1]]
    %s181 = sld [smem:[#allocation10 + $0x2]]
    %s182 = sld [smem:[#allocation10 + $0x3]]
    %s183 = sld [smem:[#allocation11]]
    %s184 = sld [smem:[#allocation11 + $0x1]]
    %s185 = sld [smem:[#allocation11 + $0x2]]
    %s186 = sld [smem:[#allocation11 + $0x3]]
    %s187 = sld [smem:[#allocation13]]
    %s188 = sld [smem:[#allocation13 + $0x1]]
    %s189 = sld [smem:[#allocation13 + $0x2]]
    %s190 = sld [smem:[#allocation13 + $0x3]]
    %s191 = sld [smem:[#allocation14]]
    %s192 = sld [smem:[#allocation14 + $0x1]]
    %s193 = sld [smem:[#allocation14 + $0x2]]
    %s194 = sld [smem:[#allocation14 + $0x3]]
    %s195 = sld [smem:[#allocation16]]
    %s196 = sld [smem:[#allocation16 + $0x1]]
    %s197 = sld [smem:[#allocation16 + $0x2]]
    %s198 = sld [smem:[#allocation16 + $0x3]]
    %s199 = sld [smem:[#allocation17]]
    %s200 = sld [smem:[#allocation17 + $0x1]]
    %s201 = sld [smem:[#allocation17 + $0x2]]
    %s202 = sld [smem:[#allocation17 + $0x3]]
    %s203 = sld [smem:[#allocation2]]
    %s204 = sld [smem:[#allocation3]]
    %v205 = vld [vmem:[#allocation19] sm:$0xff]
    %s206 = scalar_lea.vmem [#allocation19], 8
    %v207 = vld [vmem:[%s206] sm:$0xff]
    %s208 = scalar_lea.vmem [#allocation19], 16
    %v209 = vld [vmem:[%s208] sm:$0xff]
    %s210 = scalar_lea.vmem [#allocation19], 24
    %v211 = vld [vmem:[%s210] sm:$0xff]
    %s212 = scalar_lea.vmem [#allocation19], 32
    %v213 = vld [vmem:[%s212] sm:$0xff]
    %s214 = scalar_lea.vmem [#allocation19], 40
    %v215 = vld [vmem:[%s214] sm:$0xff]
    %v216 = vstv %s151
    %v217 = vmul.f32 %v205, %v216
    %v218 = vstv %s155
    %v219 = vmul.f32 %v207, %v218
    %v220 = vadd.f32 %v217, %v219
    %v221 = vstv %s159
    %v222 = vmul.f32 %v209, %v221
    %v223 = vadd.f32 %v220, %v222
    %v224 = vstv %s163
    %v225 = vmul.f32 %v211, %v224
    %v226 = vadd.f32 %v223, %v225
    %v227 = vstv %s167
    %v228 = vmul.f32 %v213, %v227
    %v229 = vadd.f32 %v226, %v228
    %v230 = vstv %s171
    %v231 = vmul.f32 %v215, %v230
    %v232 = vadd.f32 %v229, %v231
    %v233 = vstv %s175
    %v234 = vadd.f32 %v232, %v233
    %v235 = vtanh.pop %v234
    %v236 = vstv %s152
    %v237 = vmul.f32 %v205, %v236
    %v238 = vstv %s156
    %v239 = vmul.f32 %v207, %v238
    %v240 = vadd.f32 %v237, %v239
    %v241 = vstv %s160
    %v242 = vmul.f32 %v209, %v241
    %v243 = vadd.f32 %v240, %v242
    %v244 = vstv %s164
    %v245 = vmul.f32 %v211, %v244
    %v246 = vadd.f32 %v243, %v245
    %v247 = vstv %s168
    %v248 = vmul.f32 %v213, %v247
    %v249 = vadd.f32 %v246, %v248
    %v250 = vstv %s172
    %v251 = vmul.f32 %v215, %v250
    %v252 = vadd.f32 %v249, %v251
    %v253 = vstv %s176
    %v254 = vadd.f32 %v252, %v253
    %v255 = vtanh.pop %v254
    %v256 = vstv %s153
    %v257 = vmul.f32 %v205, %v256
    %v258 = vstv %s157
    %v259 = vmul.f32 %v207, %v258
    %v260 = vadd.f32 %v257, %v259
    %v261 = vstv %s161
    %v262 = vmul.f32 %v209, %v261
    %v263 = vadd.f32 %v260, %v262
    %v264 = vstv %s165
    %v265 = vmul.f32 %v211, %v264
    %v266 = vadd.f32 %v263, %v265
    %v267 = vstv %s169
    %v268 = vmul.f32 %v213, %v267
    %v269 = vadd.f32 %v266, %v268
    %v270 = vstv %s173
    %v271 = vmul.f32 %v215, %v270
    %v272 = vadd.f32 %v269, %v271
    %v273 = vstv %s177
    %v274 = vadd.f32 %v272, %v273
    %v275 = vtanh.pop %v274
    %v276 = vstv %s154
    %v277 = vmul.f32 %v205, %v276
    %v278 = vstv %s158
    %v279 = vmul.f32 %v207, %v278
    %v280 = vadd.f32 %v277, %v279
    %v281 = vstv %s162
    %v282 = vmul.f32 %v209, %v281
    %v283 = vadd.f32 %v280, %v282
    %v284 = vstv %s166
    %v285 = vmul.f32 %v211, %v284
    %v286 = vadd.f32 %v283, %v285
    %v287 = vstv %s170
    %v288 = vmul.f32 %v213, %v287
    %v289 = vadd.f32 %v286, %v288
    %v290 = vstv %s174
    %v291 = vmul.f32 %v215, %v290
    %v292 = vadd.f32 %v289, %v291
    %v293 = vstv %s178
    %v294 = vadd.f32 %v292, %v293
    %v295 = vtanh.pop %v294
    %v296 = vadd.f32 %v235, %v255
    %v297 = vadd.f32 %v296, %v275
    %v298 = vadd.f32 %v297, %v295
    %v299 = vmul.f32 %v298, 0.25
    %v300 = vsub.f32 %v235, %v299
    %v301 = vsub.f32 %v255, %v299
    %v302 = vsub.f32 %v275, %v299
    %v303 = vsub.f32 %v295, %v299
    %v304 = vmul.f32 %v300, %v300
    %v305 = vmul.f32 %v301, %v301
    %v306 = vadd.f32 %v304, %v305
    %v307 = vmul.f32 %v302, %v302
    %v308 = vadd.f32 %v306, %v307
    %v309 = vmul.f32 %v303, %v303
    %v310 = vadd.f32 %v308, %v309
    %v311 = vadd.f32 %v310, 4e-05
    %v312 = vrsqrt.pop %v311
    %v313 = vmul.f32 %v312, %v311
    %v314 = vmul.f32 %v313, %v312
    %v315 = vmul.f32 0.5, %v314
    %v316 = vsub.f32 1.5, %v315
    %v317 = vmul.f32 %v312, %v316
    %vm318 = vweird.f32 %v311
    %vm319 = vweird.f32 %v312
    %vm320 = vmor %vm318, %vm319
    %v321 = vsel %vm320, %v312, %v317
    %v322 = vmul.f32 %v300, %v321
    %v323 = vmul.f32 %v301, %v321
    %v324 = vmul.f32 %v302, %v321
    %v325 = vmul.f32 %v303, %v321
    %v326 = vstv %s179
    %v327 = vmul.f32 %v322, %v326
    %v328 = vstv %s183
    %v329 = vadd.f32 %v327, %v328
    %v330 = vmax.f32 %v329, 0.0
    %v331 = vstv %s187
    %v332 = vmul.f32 %v322, %v331
    %v333 = vstv %s191
    %v334 = vadd.f32 %v332, %v333
    %v335 = vmax.f32 %v334, 0.0
    %v336 = vstv %s195
    %v337 = vmul.f32 %v330, %v336
    %v338 = vstv %s203
    %v339 = vadd.f32 %v338, %v337
    %v340 = vstv %s199
    %v341 = vmul.f32 %v335, %v340
    %v342 = vstv %s204
    %v343 = vadd.f32 %v342, %v341
    %v344 = vstv %s180
    %v345 = vmul.f32 %v323, %v344
    %v346 = vstv %s184
    %v347 = vadd.f32 %v345, %v346
    %v348 = vmax.f32 %v347, 0.0
    %v349 = vstv %s188
    %v350 = vmul.f32 %v323, %v349
    %v351 = vstv %s192
    %v352 = vadd.f32 %v350, %v351
    %v353 = vmax.f32 %v352, 0.0
    %v354 = vstv %s196
    %v355 = vmul.f32 %v348, %v354
    %v356 = vadd.f32 %v339, %v355
    %v357 = vstv %s200
    %v358 = vmul.f32 %v353, %v357
    %v359 = vadd.f32 %v343, %v358
    %v360 = vstv %s181
    %v361 = vmul.f32 %v324, %v360
    %v362 = vstv %s185
    %v363 = vadd.f32 %v361, %v362
    %v364 = vmax.f32 %v363, 0.0
    %v365 = vstv %s189
    %v366 = vmul.f32 %v324, %v365
    %v367 = vstv %s193
    %v368 = vadd.f32 %v366, %v367
    %v369 = vmax.f32 %v368, 0.0
    %v370 = vstv %s197
    %v371 = vmul.f32 %v364, %v370
    %v372 = vadd.f32 %v356, %v371
    %v373 = vstv %s201
    %v374 = vmul.f32 %v369, %v373
    %v375 = vadd.f32 %v359, %v374
    %v376 = vstv %s182
    %v377 = vmul.f32 %v325, %v376
    %v378 = vstv %s186
    %v379 = vadd.f32 %v377, %v378
    %v380 = vmax.f32 %v379, 0.0
    %v381 = vstv %s190
    %v382 = vmul.f32 %v325, %v381
    %v383 = vstv %s194
    %v384 = vadd.f32 %v382, %v383
    %v385 = vmax.f32 %v384, 0.0
    %v386 = vstv %s198
    %v387 = vmul.f32 %v380, %v386
    %v388 = vadd.f32 %v372, %v387
    %v389 = vstv %s202
    %v390 = vmul.f32 %v385, %v389
    %v391 = vadd.f32 %v375, %v390
    %v392 = vxor.u32 %v388, 2147483648
    %v393 = vmul.f32 %v392, 1.442695
    %v394 = vpow.pop %v393
    %v395 = vadd.f32 %v394, 1.0
    %v396 = vrcp.pop %v395
    %v397 = vmul.f32 %v395, %v396
    %v398 = vsub.f32 1.0, %v397
    %v399 = vmul.f32 %v396, %v398
    %v400 = vadd.f32 %v396, %v399
    %vm401 = vweird.f32 %v395
    %vm402 = vweird.f32 %v396
    %vm403 = vmor %vm401, %vm402
    %v404 = vsel %vm403, %v396, %v400
    %v405 = vand.u32 2147483647, %v395
    %vm406 = vcmp.eq.f32.partialorder %v405, 8.507059e+37
    %v407 = vand.u32 %v395, 2147483648
    %v408 = vor.u32 1.1754944e-38, %v407
    %v409 = vsel %vm406, %v408, %v404
    %v410 = vmul.f32 1.0, %v409
    %411 = vst [vmem:[#allocation20] sm:$0xff] %v410
    %s412 = scalar_lea.vmem [#allocation20], 8
    %413 = vst [vmem:[%s412] sm:$0xff] %v391
    // Predicated region
    $region82: #{tpu_custom_call.1} parent=1 // pred_check
      _
    $region83: #{tpu_custom_call.1} parent=1 // pred_check_branch
      %415 = sbr.rel (0) target = $region85
    $region84: #{tpu_custom_call.1} parent=1 // pred_region
      %417 = vsyncadd [#allocation6], 0
      %s418 = sshll.u32 [#allocation20], 4
      %s419 = int_to_ptr.vmem [resolvable:$true] %s418
      %s420 = sshll.u32 %s11, 4
      %s421 = int_to_ptr.hbm [resolvable:$true] %s420
      %426 = dma.vmem_to_hbm [thread:$0]  %s419, 256, %s421, [#allocation6], 128, 128, 8
    $region85: #{tpu_custom_call.1} parent=1 // pred_fallthru
      _
    // Predicated region
    $region86: #{tpu_custom_call.1} parent=1 // pred_check
      _
    $region87: #{tpu_custom_call.1} parent=1 // pred_check_branch
      %428 = sbr.rel (0) target = $region89
    $region88: #{tpu_custom_call.1} parent=1 // pred_region
      %430 = dma.done [#allocation6], 256
    $region89: #{tpu_custom_call.1} parent=1 // pred_fallthru
      _
    %431 = vsyncpa [#allocation5], 1
    %432 = vsyncpa [#allocation6], 1
    %433 = vsyncpa [#allocation7], 1
    %434 = vsyncpa [#allocation9], 1
    %435 = vsyncpa [#allocation12], 1
    %436 = vsyncpa [#allocation15], 1
    %437 = vsyncpa [#allocation18], 1

</llo_original>
